<compile_context>
chip_gen: v7x
topology: tpu7x:2x2x1
jax: 0.10.0
libtpu: 0.0.40
codegen_flags: <defaults>
</compile_context>

<pallas_src>
import jax
import jax.numpy as jnp
from jax import lax
from jax.experimental import pallas as pl
from jax.experimental.pallas import tpu as pltpu


def _cdiv(a: int, b: int) -> int:
    return (a + b - 1) // b


def _round_up(x: int, m: int) -> int:
    return ((x + m - 1) // m) * m


def _sublane(dtype) -> int:
    """Native sublane multiple for a dtype: 8 (f32), 16 (bf16), 32 (int8/fp8)."""
    return max(8, 32 // jnp.dtype(dtype).itemsize)


def _physical_vmem_bytes() -> int:
    try:
        return int(pltpu.get_tpu_info().vmem_capacity_bytes)
    except Exception:
        return 64 << 20  # conservative fallback: v7x per-TensorCore VMEM


def filtering_kernel(params_ref, fuse_ref, len_ref, out_ref):
    # params_ref is a (2,) f32 array in SMEM: [u, beta].
    u = params_ref[0]
    beta = params_ref[1]
    fuse = fuse_ref[...].astype(jnp.float32)
    # Clamp so rsqrt of unspecified boundary-block data stays finite; the real
    # data path is unchanged (lengths are strictly positive by precondition).
    length = jnp.maximum(len_ref[...].astype(jnp.float32), jnp.float32(1e-30))
    inv_sqrt_len = lax.rsqrt(length)                   # single EUP op
    out = (fuse - u * length - beta) * inv_sqrt_len    # VPU elementwise
    out_ref[...] = out.astype(out_ref.dtype)


def filtering_linear_regression(fuse_score, length, u, beta,
                                *, tile_rows=1024, tile_cols=1024):
    """Pallas wrapper.

    fuse_score, length: [R, C] arrays (any float dtype; math done in f32).
    u, beta:            shape-(1,) scalar parameters.
    length must be strictly positive (same precondition as the PyTorch module).
    """
    assert fuse_score.shape == length.shape
    orig_shape = fuse_score.shape
    R, C = orig_shape
    out_dtype = fuse_score.dtype
    in_item = jnp.dtype(fuse_score.dtype).itemsize
    len_item = jnp.dtype(length.dtype).itemsize
    out_item = jnp.dtype(out_dtype).itemsize

    # ---- lane-dense layout: refold (R, C) -> (N, L), L % 128 == 0, when the
    # trailing dim is not lane-dense and the element count allows it.
    R2, C2 = R, C
    reshaped = False
    if C % 128 != 0:
        total = R * C
        for L in (4096, 2048, 1024, 512, 256, 128):
            if total % L == 0:
                R2, C2 = total // L, L
                reshaped = True
                break
    if reshaped:
        fuse2 = fuse_score.reshape(R2, C2)
        len2 = length.reshape(R2, C2)
    else:
        fuse2, len2 = fuse_score, length

    # ---- tile selection (dtype-aware sublane, lane-dense cols, no padding) --
    sub = max(_sublane(fuse_score.dtype), _sublane(length.dtype),
              _sublane(out_dtype))
    tr = min(_round_up(tile_rows, sub), _round_up(R2, sub))
    tc = min(_round_up(tile_cols, 128), _round_up(C2, 128))

    # v7x has 2 TensorCores: make sure a mid/large array gets >= 2 grid steps
    # along the parallel row axis instead of collapsing to one block.
    total_bytes = R2 * C2 * max(in_item, len_item, out_item)
    if (_cdiv(R2, tr) * _cdiv(C2, tc) == 1 and total_bytes > (1 << 20)
            and R2 > sub):
        tr = max(sub, _round_up(_cdiv(R2, 2), sub))

    # ---- VMEM budgeting: per-array dtypes, buffer depth, physical cap ------
    phys_vmem = _physical_vmem_bytes()
    budget = max(16 << 20, phys_vmem - (12 << 20))     # leave headroom

    def _vmem_needed(tr_, tc_, in_buf_, out_buf_):
        per_block = tr_ * tc_
        raw = per_block * ((in_item + len_item) * in_buf_ + out_item * out_buf_)
        return int(raw * 1.1) + (1 << 20)

    n_steps = _cdiv(R2, tr) * _cdiv(C2, tc)
    in_buf = 3 if n_steps > 2 else 2   # deeper input pipeline hides DMA issue
    while _vmem_needed(tr, tc, in_buf, 2) > budget:
        if in_buf > 2:
            in_buf = 2
        elif tc > 128:
            tc = max(128, _round_up(tc // 2, 128))
        elif tr > sub:
            tr = max(sub, _round_up(tr // 2, sub))
        else:
            break
    vmem_limit = int(min(max(32 << 20, _vmem_needed(tr, tc, in_buf, 2)), budget))

    grid = (_cdiv(R2, tr), _cdiv(C2, tc))

    # Single (2,) scalar array in SMEM: [u, beta].
    params = jnp.concatenate(
        [jnp.asarray(u, jnp.float32).reshape(1),
         jnp.asarray(beta, jnp.float32).reshape(1)])

    def data_spec(depth):
        kwargs = {}
        if depth > 2:
            kwargs["pipeline_mode"] = pl.Buffered(depth)
        return pl.BlockSpec((tr, tc), lambda i, j: (i, j), **kwargs)

    out2 = pl.pallas_call(
        filtering_kernel,
        out_shape=jax.ShapeDtypeStruct((R2, C2), out_dtype),
        grid=grid,
        in_specs=[
            pl.BlockSpec(memory_space=pltpu.SMEM),     # [u, beta]
            data_spec(in_buf),                         # fuse_score
            data_spec(in_buf),                         # length
        ],
        out_specs=pl.BlockSpec((tr, tc), lambda i, j: (i, j)),
        compiler_params=pltpu.CompilerParams(
            dimension_semantics=("parallel", "parallel"),
            vmem_limit_bytes=vmem_limit),
    )(params, fuse2, len2)

    if reshaped:
        out2 = out2.reshape(orig_shape)
    return out2


if __name__ == "__main__":
    key = jax.random.PRNGKey(0)
    k1, k2, k3, k4 = jax.random.split(key, 4)

    # Deterministic parameter init, exactly as reset_parameter(): constant 0.0
    u = jnp.zeros((1,), dtype=jnp.float32)
    beta = jnp.zeros((1,), dtype=jnp.float32)

    def reference(fuse, length, u, beta):
        return (fuse - u[0] * length - beta[0]) / jnp.sqrt(length)

    # Main demo: 16 "utterances" x 128 score entries (lane-dense last dim).
    R, C = 16, 128
    fuse_score = jax.random.normal(k1, (R, C), dtype=jnp.float32)
    length = jax.random.uniform(k2, (R, C), dtype=jnp.float32,
                                minval=1.0, maxval=100.0)
    out = jax.block_until_ready(
        filtering_linear_regression(fuse_score, length, u, beta))
    ref = reference(fuse_score, length, u, beta)
    assert out.shape == ref.shape and out.dtype == ref.dtype
    assert jnp.allclose(out, ref, rtol=1e-5, atol=1e-6), (
        float(jnp.max(jnp.abs(out - ref))))

    # Ragged shape: exercises the cdiv-grid boundary masking (no wrapper pad).
    fuse_r = jax.random.normal(k3, (37, 100), dtype=jnp.float32)
    len_r = jax.random.uniform(k4, (37, 100), dtype=jnp.float32,
                               minval=1.0, maxval=50.0)
    out_r = jax.block_until_ready(
        filtering_linear_regression(fuse_r, len_r, u, beta))
    ref_r = reference(fuse_r, len_r, u, beta)
    assert out_r.shape == ref_r.shape
    assert jnp.allclose(out_r, ref_r, rtol=1e-5, atol=1e-6), (
        float(jnp.max(jnp.abs(out_r - ref_r))))

    print("KERNEL_OK")
</pallas_src>

<mosaic_0001>
module attributes {stable_mosaic.version = 11 : i64} {
  func.func @filtering_kernel(%arg0: i32, %arg1: i32, %arg2: memref<2xf32, #tpu.memory_space<smem>>, %arg3: memref<16x128xf32, #tpu.memory_space<vmem>>, %arg4: memref<16x128xf32, #tpu.memory_space<vmem>>, %arg5: memref<16x128xf32, #tpu.memory_space<vmem>>) attributes {dimension_semantics = [#tpu.dimension_semantics<parallel>, #tpu.dimension_semantics<parallel>], iteration_bounds = array<i64: 1, 1>, scalar_prefetch = 0 : i64, scratch_operands = 0 : i64, tpu.core_type = #tpu.core_type<tc>, window_params = [{transform_indices = @transform_0, window_bounds = array<i64: 2>}, {transform_indices = @transform_1, window_bounds = array<i64: 16, 128>}, {transform_indices = @transform_2, window_bounds = array<i64: 16, 128>}, {transform_indices = @transform_3, window_bounds = array<i64: 16, 128>}]} {
    %c0 = arith.constant 0 : index
    %0 = memref.load %arg2[%c0] : memref<2xf32, #tpu.memory_space<smem>>
    %c1 = arith.constant 1 : index
    %1 = memref.load %arg2[%c1] : memref<2xf32, #tpu.memory_space<smem>>
    %c0_0 = arith.constant 0 : index
    %c0_1 = arith.constant 0 : index
    %2 = vector.load %arg3[%c0_0, %c0_1] : memref<16x128xf32, #tpu.memory_space<vmem>>, vector<16x128xf32>
    %c0_2 = arith.constant 0 : index
    %c0_3 = arith.constant 0 : index
    %3 = vector.load %arg4[%c0_2, %c0_3] : memref<16x128xf32, #tpu.memory_space<vmem>>, vector<16x128xf32>
    %cst = arith.constant 1.000000e-30 : f32
    %4 = vector.broadcast %cst : f32 to vector<16x128xf32>
    %5 = arith.maximumf %3, %4 : vector<16x128xf32>
    %6 = math.rsqrt %5 : vector<16x128xf32>
    %7 = vector.broadcast %0 : f32 to vector<16x128xf32>
    %8 = arith.mulf %7, %5 : vector<16x128xf32>
    %9 = arith.subf %2, %8 : vector<16x128xf32>
    %10 = vector.broadcast %1 : f32 to vector<16x128xf32>
    %11 = arith.subf %9, %10 : vector<16x128xf32>
    %12 = arith.mulf %11, %6 : vector<16x128xf32>
    %c0_4 = arith.constant 0 : index
    %c0_5 = arith.constant 0 : index
    %13 = vector.load %arg5[%c0_4, %c0_5] : memref<16x128xf32, #tpu.memory_space<vmem>>, vector<16x128xf32>
    tpu.vector_store %arg5[%c0_4, %c0_5], %12 {strides = array<i32>} : memref<16x128xf32, #tpu.memory_space<vmem>>, vector<16x128xf32>,
    return
  }
  func.func @transform_0(%arg0: i32, %arg1: i32) -> i32 {
    %c0_i32 = arith.constant 0 : i32
    %c0_i32_0 = arith.constant 0 : i32
    return %c0_i32 : i32
  }
  func.func @transform_1(%arg0: i32, %arg1: i32) -> (i32, i32) {
    %c0_i32 = arith.constant 0 : i32
    return %arg0, %arg1 : i32, i32
  }
  func.func @transform_2(%arg0: i32, %arg1: i32) -> (i32, i32) {
    %c0_i32 = arith.constant 0 : i32
    return %arg0, %arg1 : i32, i32
  }
  func.func @transform_3(%arg0: i32, %arg1: i32) -> (i32, i32) {
    %c0_i32 = arith.constant 0 : i32
    return %arg0, %arg1 : i32, i32
  }
}

</mosaic_0001>

<llo_original>
// kernel: tpu_custom_call.1
$region0: #{tpu_custom_call.1}
  #allocation0 [shape = 'u32[]', space=smem, size = 0x4, offset = 0x4, fixed_abs, tag = 'smem constant byte address 0x4 - core index']
  #allocation1 [shape = 'u32[144,128]{1,0:T(1,128)}', space=vmem, size = 0x12000, scoped, tag = 'internal scratch']
  %s0 = inlined_call_operand.hbm [shape: f32[2], index: 0, kind: input, shape index: {}]
  %s1 = inlined_call_operand.hbm [shape: f32[16,128], index: 1, kind: input, shape index: {}]
  %s2 = inlined_call_operand.hbm [shape: f32[16,128], index: 2, kind: input, shape index: {}]
  %s3 = inlined_call_operand.hbm [shape: f32[16,128], index: 3, kind: output, shape index: {}]
  %s4 = sld [smem:[#allocation0]]
  $region34: #{tpu_custom_call.1} parent=0
    _
  %s6 = ssub.s32 1, %s4
  %s7 = scalar_select 0, %s6, %s4
  $region1: #{tpu_custom_call.1} parent=0
    #allocation2 [shape = 'u8[512]{0}', space=smem, size = 0x200, scoped, tag = 'input window, operand 0, single buffered']
    #allocation3 [shape = 's32[1]{0}', space=sflag, size = 0x4, scoped, tag = 'scoped memory for tpu_custom_call.1']
    #allocation4 [shape = 's32[1]{0}', space=sflag, size = 0x4, scoped, tag = 'scoped memory for tpu_custom_call.1']
    #allocation5 [shape = 's32[1]{0}', space=sflag, size = 0x4, scoped, tag = 'scoped memory for tpu_custom_call.1']
    #allocation6 [shape = 'u8[8192]{0}', space=vmem, size = 0x2000, scoped, tag = 'input window, operand 1, single buffered']
    #allocation7 [shape = 'u8[8192]{0}', space=vmem, size = 0x2000, scoped, tag = 'input window, operand 2, single buffered']
    #allocation8 [shape = 's32[1]{0}', space=sflag, size = 0x4, scoped, tag = 'scoped memory for tpu_custom_call.1']
    #allocation9 [shape = 'u8[8192]{0}', space=vmem, size = 0x2000, scoped, tag = 'output window, operand 0, single buffered']
    %8 = vsyncpa [#allocation5], 0
    %9 = vsyncpa [#allocation3], 0
    %10 = vsyncpa [#allocation8], 0
    %11 = vsyncpa [#allocation4], 0
    // Predicated region
    $region2: #{tpu_custom_call.1} parent=1 // pred_check
      _
    $region3: #{tpu_custom_call.1} parent=1 // pred_check_branch
      %13 = sbr.rel (0) target = $region5
    $region4: #{tpu_custom_call.1} parent=1 // pred_region
      %s15 = ssub.s32 16, 16
      %16 = vsyncadd [#allocation5], %s15
      %19 = dma.hbm_to_smem %s0, 16, [#allocation2], [#allocation5]
    $region5: #{tpu_custom_call.1} parent=1 // pred_fallthru
      _
    // Predicated region
    $region6: #{tpu_custom_call.1} parent=1 // pred_check
      _
    $region7: #{tpu_custom_call.1} parent=1 // pred_check_branch
      %21 = sbr.rel (0) target = $region9
    $region8: #{tpu_custom_call.1} parent=1 // pred_region
      %s23 = ssub.s32 256, 256
      %24 = vsyncadd [#allocation3], %s23
      %s25 = sshll.u32 [#allocation6], 4
      %s26 = int_to_ptr.vmem [resolvable:$true] %s25
      %31 = dma.hbm_to_vmem [thread:$0]  %s1, 256, %s26, [#allocation3], 128, 128, 8
    $region9: #{tpu_custom_call.1} parent=1 // pred_fallthru
      _
    // Predicated region
    $region10: #{tpu_custom_call.1} parent=1 // pred_check
      _
    $region11: #{tpu_custom_call.1} parent=1 // pred_check_branch
      %33 = sbr.rel (0) target = $region13
    $region12: #{tpu_custom_call.1} parent=1 // pred_region
      %s35 = ssub.s32 256, 256
      %36 = vsyncadd [#allocation8], %s35
      %s37 = sshll.u32 [#allocation7], 4
      %s38 = int_to_ptr.vmem [resolvable:$true] %s37
      %43 = dma.hbm_to_vmem [thread:$0]  %s2, 256, %s38, [#allocation8], 128, 128, 8
    $region13: #{tpu_custom_call.1} parent=1 // pred_fallthru
      _
    // Predicated region
    $region14: #{tpu_custom_call.1} parent=1 // pred_check
      _
    $region15: #{tpu_custom_call.1} parent=1 // pred_check_branch
      %45 = sbr.rel (0) target = $region17
    $region16: #{tpu_custom_call.1} parent=1 // pred_region
      %46 = dma.done [#allocation5], 16
    $region17: #{tpu_custom_call.1} parent=1 // pred_fallthru
      _
    // Predicated region
    $region18: #{tpu_custom_call.1} parent=1 // pred_check
      _
    $region19: #{tpu_custom_call.1} parent=1 // pred_check_branch
      %48 = sbr.rel (0) target = $region21
    $region20: #{tpu_custom_call.1} parent=1 // pred_region
      %49 = dma.done [#allocation3], 256
    $region21: #{tpu_custom_call.1} parent=1 // pred_fallthru
      _
    // Predicated region
    $region22: #{tpu_custom_call.1} parent=1 // pred_check
      _
    $region23: #{tpu_custom_call.1} parent=1 // pred_check_branch
      %51 = sbr.rel (0) target = $region25
    $region24: #{tpu_custom_call.1} parent=1 // pred_region
      %52 = dma.done [#allocation8], 256
    $region25: #{tpu_custom_call.1} parent=1 // pred_fallthru
      _
    %53 = sfence
    %s54 = sld [smem:[#allocation2]]
    %s55 = sld [smem:[#allocation2 + $0x1]]
    %v56 = vld [vmem:[#allocation6] sm:$0xff]
    %v57 = vld [vmem:[#allocation6 + $0x8] sm:$0xff]
    %v58 = vld [vmem:[#allocation7] sm:$0xff]
    %v59 = vld [vmem:[#allocation7 + $0x8] sm:$0xff]
    %v60 = vmax.f32 %v58, 1e-30
    %v61 = vmax.f32 %v59, 1e-30
    %v62 = vrsqrt.pop %v60
    %v63 = vrsqrt.pop %v61
    %v64 = vstv %s54
    %v65 = vmul.f32 %v64, %v60
    %v66 = vmul.f32 %v64, %v61
    %v67 = vsub.f32 %v56, %v65
    %v68 = vsub.f32 %v57, %v66
    %v69 = vstv %s55
    %v70 = vsub.f32 %v67, %v69
    %v71 = vsub.f32 %v68, %v69
    %v72 = vmul.f32 %v70, %v62
    %v73 = vmul.f32 %v71, %v63
    %74 = vst [vmem:[#allocation9] sm:$0xff] %v72
    %75 = vst [vmem:[#allocation9 + $0x8] sm:$0xff] %v73
    // Predicated region
    $region26: #{tpu_custom_call.1} parent=1 // pred_check
      _
    $region27: #{tpu_custom_call.1} parent=1 // pred_check_branch
      %77 = sbr.rel (0) target = $region29
    $region28: #{tpu_custom_call.1} parent=1 // pred_region
      %s79 = ssub.s32 256, 256
      %80 = vsyncadd [#allocation4], %s79
      %s81 = sshll.u32 [#allocation9], 4
      %s82 = int_to_ptr.vmem [resolvable:$true] %s81
      %87 = dma.vmem_to_hbm [thread:$0]  %s82, 256, %s3, [#allocation4], 128, 128, 8
    $region29: #{tpu_custom_call.1} parent=1 // pred_fallthru
      _
    // Predicated region
    $region30: #{tpu_custom_call.1} parent=1 // pred_check
      _
    $region31: #{tpu_custom_call.1} parent=1 // pred_check_branch
      %89 = sbr.rel (0) target = $region33
    $region32: #{tpu_custom_call.1} parent=1 // pred_region
      %90 = dma.done [#allocation4], 256
    $region33: #{tpu_custom_call.1} parent=1 // pred_fallthru
      _
    %91 = vsyncpa [#allocation3], 1
    %92 = vsyncpa [#allocation8], 1
    %93 = vsyncpa [#allocation4], 1
    %94 = vsyncpa [#allocation5], 1

</llo_original>
